<compile_context>
chip_gen: v5e
topology: v5e:2x2
jax: 0.10.0
libtpu: 0.0.40
codegen_flags: <defaults>
</compile_context>

<pallas_src>
import jax
import jax.numpy as jnp
from jax import lax
from jax.experimental import pallas as pl
from jax.experimental.pallas import tpu as pltpu

_EPS = 1e-12  # F.normalize default eps


def _round_up(x, m):
    return (x + m - 1) // m * m


def _pick_tile(n, tile_max, align):
    """Pick a tile size (multiple of `align`, <= ~tile_max) balanced against n.

    Returns (tile, padded_n) with padded_n an exact multiple of tile.
    """
    n_al = _round_up(max(int(n), 1), align)
    steps = -(-n_al // tile_max)                 # cdiv
    tile = _round_up(-(-n_al // steps), align)   # cdiv then align
    return tile, steps * tile


def _colscale_kernel(w_ref, b_ref, s_ref, ssq_ref):
    # grid = (O_pad//tn, F_pad//tk); w_ref: (tk, tn), b_ref: (1, tn)
    k = pl.program_id(1)

    @pl.when(k == 0)
    def _():
        ssq_ref[...] = jnp.zeros_like(ssq_ref)

    w = w_ref[...]
    ssq_ref[...] += jnp.sum(w * w, axis=0, keepdims=True)           # (1, tn)

    @pl.when(k == pl.num_programs(1) - 1)
    def _():
        # bias / max(||w_col||, eps), folded into one scale vector.
        s_ref[...] = b_ref[...] * lax.rsqrt(jnp.maximum(ssq_ref[...], _EPS * _EPS))


def _cosine_matmul_kernel(s_ref, x_ref, w_ref, o_ref, acc_ref, rssq_ref):
    # grid = (B_pad//tm, O_pad//tn, F_pad//tk)
    # s_ref: (1, tn) folded scale, x_ref: (tm, tk), w_ref: (tk, tn)
    j = pl.program_id(1)
    k = pl.program_id(2)

    @pl.when(k == 0)
    def _():
        acc_ref[...] = jnp.zeros_like(acc_ref)

    @pl.when((j == 0) & (k == 0))
    def _():
        rssq_ref[...] = jnp.zeros_like(rssq_ref)

    x = x_ref[...]

    # Row sum-of-squares is computed once per batch tile (only while j == 0;
    # the x block index (i, k) is identical for all j, so it is reused afterwards).
    @pl.when(j == 0)
    def _():
        rssq_ref[...] += jnp.sum(x * x, axis=1, keepdims=True)      # (tm, 1)

    acc_ref[...] += jnp.dot(x, w_ref[...], preferred_element_type=jnp.float32)

    @pl.when(k == pl.num_programs(2) - 1)
    def _():
        inv_row = lax.rsqrt(jnp.maximum(rssq_ref[...], _EPS * _EPS))  # 1/max(||x_row||, eps)
        o_ref[...] = acc_ref[...] * inv_row * s_ref[...]


def cosine_similarity_forward(x, weights, bias, old_weights=None, old_bias=None,
                              momentum=0.9, is_center=False,
                              tm_max=512, tn_max=512, tk_max=1024):
    """Mirrors CosineSimilarity.forward. Returns (output, new_weights, new_bias)."""
    x = x.astype(jnp.float32)
    weights = weights.astype(jnp.float32)
    bias = bias.astype(jnp.float32)
    if momentum:
        assert old_weights is not None and old_bias is not None, \
            "momentum requires old_weights / old_bias buffers"
        weights = momentum * weights + (1.0 - momentum) * old_weights.astype(jnp.float32)
        bias = momentum * bias + (1.0 - momentum) * old_bias.astype(jnp.float32)
    if is_center:
        weights = weights - jnp.mean(weights, axis=0, keepdims=True)
        x = x - jnp.mean(x, axis=0, keepdims=True)

    B, F = x.shape
    F2, O = weights.shape
    assert F == F2 and bias.shape == (O,)

    # Balanced tiles; padded sizes are exact multiples of the tiles (grid covers
    # every output column -> fixes the dropped-column bug of the previous version).
    tm, B_pad = _pick_tile(B, tm_max, 8)
    tn, O_pad = _pick_tile(O, tn_max, 128)
    tk, F_pad = _pick_tile(F, tk_max, 128)
    ni, nj, nk = B_pad // tm, O_pad // tn, F_pad // tk

    # Zero padding: padded x rows / W cols / W rows contribute 0 to sums and matmul,
    # padded bias entries are 0, so padded outputs are 0 and sliced away below.
    x_p = jnp.pad(x, ((0, B_pad - B), (0, F_pad - F)))
    w_p = jnp.pad(weights, ((0, F_pad - F), (0, O_pad - O)))
    b_p = jnp.pad(bias.reshape(1, O), ((0, 0), (0, O_pad - O)))

    # ~11 MiB actual footprint at the max tiles; 56 MiB limit is safe on v7x's
    # 64 MiB physical VMEM and well under v5e/v6e's 128 MiB.
    vmem_limit = 56 * 1024 * 1024

    # Pass 1 (hoisted out of the batch loop): per-class folded scale, tiny (1, O) output.
    colscale = pl.pallas_call(
        _colscale_kernel,
        out_shape=jax.ShapeDtypeStruct((1, O_pad), jnp.float32),
        grid_spec=pltpu.PrefetchScalarGridSpec(
            num_scalar_prefetch=0,
            grid=(nj, nk),
            in_specs=[
                pl.BlockSpec((tk, tn), lambda j, k: (k, j)),
                pl.BlockSpec((1, tn), lambda j, k: (0, j)),
            ],
            out_specs=pl.BlockSpec((1, tn), lambda j, k: (0, j)),
            scratch_shapes=[pltpu.VMEM((1, tn), jnp.float32)],
        ),
        compiler_params=pltpu.CompilerParams(
            dimension_semantics=("parallel", "arbitrary"),
            vmem_limit_bytes=vmem_limit),
    )(w_p, b_p)

    # Pass 2: tiled, pipelined matmul with K accumulation; normalization scales
    # applied to the (tm, tn) output tile at the last K step.
    out = pl.pallas_call(
        _cosine_matmul_kernel,
        out_shape=jax.ShapeDtypeStruct((B_pad, O_pad), jnp.float32),
        grid_spec=pltpu.PrefetchScalarGridSpec(
            num_scalar_prefetch=0,
            grid=(ni, nj, nk),
            in_specs=[
                pl.BlockSpec((1, tn), lambda i, j, k: (0, j)),
                pl.BlockSpec((tm, tk), lambda i, j, k: (i, k)),
                pl.BlockSpec((tk, tn), lambda i, j, k: (k, j)),
            ],
            out_specs=pl.BlockSpec((tm, tn), lambda i, j, k: (i, j)),
            scratch_shapes=[pltpu.VMEM((tm, tn), jnp.float32),
                            pltpu.VMEM((tm, 1), jnp.float32)],
        ),
        compiler_params=pltpu.CompilerParams(
            # i parallel (megacore split on batch tiles); j must stay ordered because
            # the x row-norm scratch is filled at j==0; k is the reduction axis.
            dimension_semantics=("parallel", "arbitrary", "arbitrary"),
            vmem_limit_bytes=vmem_limit),
    )(colscale, x_p, w_p)

    return out[:B, :O], weights, bias


def _reference(x, w, b, ow, ob, momentum, is_center):
    if momentum:
        w = momentum * w + (1.0 - momentum) * ow
        b = momentum * b + (1.0 - momentum) * ob
    if is_center:
        w = w - jnp.mean(w, axis=0, keepdims=True)
        x = x - jnp.mean(x, axis=0, keepdims=True)
    xn = x / jnp.maximum(jnp.linalg.norm(x, axis=1, keepdims=True), _EPS)
    wn = w / jnp.maximum(jnp.linalg.norm(w, axis=0, keepdims=True), _EPS)
    return xn @ wn * b


if __name__ == "__main__":
    key = jax.random.PRNGKey(0)

    def make_inputs(key, B, IN_F, OUT_F):
        k_x, k_w, k_b, k_ow, k_ob = jax.random.split(key, 5)
        x = jax.random.normal(k_x, (B, IN_F), dtype=jnp.float32)
        # weights ~ N(0, 0.005), bias ~ N(10, 0.001); same distributions for buffers.
        w = 0.005 * jax.random.normal(k_w, (IN_F, OUT_F), dtype=jnp.float32)
        b = 10.0 + 0.001 * jax.random.normal(k_b, (OUT_F,), dtype=jnp.float32)
        ow = 0.005 * jax.random.normal(k_ow, (IN_F, OUT_F), dtype=jnp.float32)
        ob = 10.0 + 0.001 * jax.random.normal(k_ob, (OUT_F,), dtype=jnp.float32)
        return x, w, b, ow, ob

    # Case 1: small shapes consistent with the module (batch=8, in=256, out=31).
    k1, k2 = jax.random.split(key)
    x, w, b, ow, ob = make_inputs(k1, B=8, IN_F=256, OUT_F=31)
    out, _, _ = cosine_similarity_forward(x, w, b, ow, ob, momentum=0.9, is_center=False)
    out = jax.block_until_ready(out)
    ref = _reference(x, w, b, ow, ob, momentum=0.9, is_center=False)
    assert out.shape == (8, 31)
    assert jnp.allclose(out, ref, atol=1e-5, rtol=1e-5), "case 1 mismatch vs reference"

    # Case 2: non-aligned shapes + small tile caps -> multi-tile grid on every axis
    # (exercises the O-coverage fix, the K accumulator and the j==0 row-norm cache).
    x, w, b, ow, ob = make_inputs(k2, B=72, IN_F=384, OUT_F=200)
    out, _, _ = cosine_similarity_forward(x, w, b, ow, ob, momentum=0.9, is_center=True,
                                          tm_max=32, tn_max=128, tk_max=128)
    out = jax.block_until_ready(out)
    ref = _reference(x, w, b, ow, ob, momentum=0.9, is_center=True)
    assert out.shape == (72, 200)
    assert jnp.allclose(out, ref, atol=1e-5, rtol=1e-5), "case 2 mismatch vs reference"

    print("KERNEL_OK")
</pallas_src>

<mosaic_0001>
module attributes {stable_mosaic.version = 11 : i64} {
  func.func @_colscale_kernel(%arg0: i32, %arg1: i32, %arg2: memref<256x128xf32, #tpu.memory_space<vmem>>, %arg3: memref<1x128xf32, #tpu.memory_space<vmem>>, %arg4: memref<1x128xf32, #tpu.memory_space<vmem>>, %arg5: memref<1x128xf32, #tpu.memory_space<vmem>>) attributes {dimension_semantics = [#tpu.dimension_semantics<parallel>, #tpu.dimension_semantics<arbitrary>], iteration_bounds = array<i64: 1, 1>, scalar_prefetch = 0 : i64, scratch_operands = 1 : i64, tpu.core_type = #tpu.core_type<tc>, window_params = [{transform_indices = @transform_0, window_bounds = array<i64: 256, 128>}, {transform_indices = @transform_1, window_bounds = array<i64: 1, 128>}, {transform_indices = @transform_2, window_bounds = array<i64: 1, 128>}]} {
    %c0_i32 = arith.constant 0 : i32
    %0 = arith.cmpi eq, %arg1, %c0_i32 : i32
    %1 = arith.extui %0 : i1 to i32
    %c0_i32_0 = arith.constant 0 : i32
    %2 = arith.cmpi ne, %1, %c0_i32_0 : i32
    scf.if %2 {
      %cst_8 = arith.constant 0.000000e+00 : f32
      %13 = vector.broadcast %cst_8 : f32 to vector<1x128xf32>
      %c0_9 = arith.constant 0 : index
      %c0_10 = arith.constant 0 : index
      %14 = vector.load %arg5[%c0_9, %c0_10] : memref<1x128xf32, #tpu.memory_space<vmem>>, vector<1x128xf32>
      tpu.vector_store %arg5[%c0_9, %c0_10], %13 {strides = array<i32>} : memref<1x128xf32, #tpu.memory_space<vmem>>, vector<1x128xf32>,
    } else {
    }
    %c0 = arith.constant 0 : index
    %c0_1 = arith.constant 0 : index
    %3 = vector.load %arg2[%c0, %c0_1] : memref<256x128xf32, #tpu.memory_space<vmem>>, vector<256x128xf32>
    %c0_2 = arith.constant 0 : index
    %c0_3 = arith.constant 0 : index
    %4 = vector.load %arg5[%c0_2, %c0_3] : memref<1x128xf32, #tpu.memory_space<vmem>>, vector<1x128xf32>
    %5 = arith.mulf %3, %3 : vector<256x128xf32>
    %cst = arith.constant dense<0.000000e+00> : vector<128xf32>
    %6 = vector.multi_reduction <add>, %5, %cst [0] : vector<256x128xf32> to vector<128xf32>
    %7 = vector.shape_cast %6 : vector<128xf32> to vector<1x128xf32>
    %8 = arith.addf %4, %7 : vector<1x128xf32>
    %c0_4 = arith.constant 0 : index
    %c0_5 = arith.constant 0 : index
    %9 = vector.load %arg5[%c0_4, %c0_5] : memref<1x128xf32, #tpu.memory_space<vmem>>, vector<1x128xf32>
    tpu.vector_store %arg5[%c0_4, %c0_5], %8 {strides = array<i32>} : memref<1x128xf32, #tpu.memory_space<vmem>>, vector<1x128xf32>,
    %c0_i32_6 = arith.constant 0 : i32
    %10 = arith.cmpi eq, %arg1, %c0_i32_6 : i32
    %11 = arith.extui %10 : i1 to i32
    %c0_i32_7 = arith.constant 0 : i32
    %12 = arith.cmpi ne, %11, %c0_i32_7 : i32
    scf.if %12 {
      %c0_8 = arith.constant 0 : index
      %c0_9 = arith.constant 0 : index
      %13 = vector.load %arg3[%c0_8, %c0_9] : memref<1x128xf32, #tpu.memory_space<vmem>>, vector<1x128xf32>
      %c0_10 = arith.constant 0 : index
      %c0_11 = arith.constant 0 : index
      %14 = vector.load %arg5[%c0_10, %c0_11] : memref<1x128xf32, #tpu.memory_space<vmem>>, vector<1x128xf32>
      %cst_12 = arith.constant 1.000000e-24 : f32
      %15 = vector.broadcast %cst_12 : f32 to vector<1x128xf32>
      %16 = arith.maximumf %14, %15 : vector<1x128xf32>
      %17 = math.rsqrt %16 : vector<1x128xf32>
      %18 = arith.mulf %13, %17 : vector<1x128xf32>
      %c0_13 = arith.constant 0 : index
      %c0_14 = arith.constant 0 : index
      %19 = vector.load %arg4[%c0_13, %c0_14] : memref<1x128xf32, #tpu.memory_space<vmem>>, vector<1x128xf32>
      tpu.vector_store %arg4[%c0_13, %c0_14], %18 {strides = array<i32>} : memref<1x128xf32, #tpu.memory_space<vmem>>, vector<1x128xf32>,
    } else {
    }
    return
  }
  func.func @transform_0(%arg0: i32, %arg1: i32) -> (i32, i32) {
    %c0_i32 = arith.constant 0 : i32
    return %arg1, %arg0 : i32, i32
  }
  func.func @transform_1(%arg0: i32, %arg1: i32) -> (i32, i32) {
    %c0_i32 = arith.constant 0 : i32
    %c0_i32_0 = arith.constant 0 : i32
    return %c0_i32, %arg0 : i32, i32
  }
  func.func @transform_2(%arg0: i32, %arg1: i32) -> (i32, i32) {
    %c0_i32 = arith.constant 0 : i32
    %c0_i32_0 = arith.constant 0 : i32
    return %c0_i32, %arg0 : i32, i32
  }
}

</mosaic_0001>

<llo_original>
// kernel: tpu_custom_call.1
$region0: #{tpu_custom_call.1}
  #allocation0 [shape = 'u32[]', space=smem, size = 0x4, offset = 0x4, fixed_abs, tag = 'smem constant byte address 0x4 - core index']
  #allocation1 [shape = 'u32[72,128]{1,0:T(1,128)}', space=vmem, size = 0x9000, scoped, tag = 'internal scratch']
  #allocation2 [shape = 'f32[1,128]{1,0:T(1,128)}', space=vmem, size = 0x200, scoped, tag = 'scratch operand']
  %s0 = inlined_call_operand.hbm [shape: f32[256,128], index: 0, kind: input, shape index: {}]
  %s1 = inlined_call_operand.hbm [shape: f32[1,128], index: 1, kind: input, shape index: {}]
  %s2 = inlined_call_operand.hbm [shape: f32[1,128], index: 2, kind: output, shape index: {}]
  %s3 = sld [smem:[#allocation0]]
  $region34: #{tpu_custom_call.1} parent=0
    _
  %s5 = ssub.s32 1, %s3
  %s6 = scalar_select 0, %s5, %s3
  $region1: #{tpu_custom_call.1} parent=0
    #allocation3 [shape = 'u8[131072]{0}', space=vmem, size = 0x20000, scoped, tag = 'input window, operand 0, single buffered']
    #allocation4 [shape = 's32[1]{0}', space=sflag, size = 0x4, scoped, tag = 'scoped memory for tpu_custom_call.1']
    #allocation5 [shape = 's32[1]{0}', space=sflag, size = 0x4, scoped, tag = 'scoped memory for tpu_custom_call.1']
    #allocation6 [shape = 'u8[512]{0}', space=vmem, size = 0x400, scoped, tag = 'input window, operand 1, single buffered']
    #allocation7 [shape = 's32[1]{0}', space=sflag, size = 0x4, scoped, tag = 'scoped memory for tpu_custom_call.1']
    #allocation8 [shape = 'u8[512]{0}', space=vmem, size = 0x400, scoped, tag = 'output window, operand 0, single buffered']
    %7 = vsyncpa [#allocation4], 0
    %8 = vsyncpa [#allocation7], 0
    %9 = vsyncpa [#allocation5], 0
    // Predicated region
    $region2: #{tpu_custom_call.1} parent=1 // pred_check
      _
    $region3: #{tpu_custom_call.1} parent=1 // pred_check_branch
      %11 = sbr.rel (0) target = $region5
    $region4: #{tpu_custom_call.1} parent=1 // pred_region
      %13 = vsyncadd [#allocation4], 0
      %s14 = sshll.u32 %s0, 4
      %s15 = int_to_ptr.hbm [resolvable:$true] %s14
      %s16 = sshll.u32 [#allocation3], 4
      %s17 = int_to_ptr.vmem [resolvable:$true] %s16
      %22 = dma.hbm_to_vmem [thread:$0]  %s15, 4096, %s17, [#allocation4], 128, 128, 8
    $region5: #{tpu_custom_call.1} parent=1 // pred_fallthru
      _
    // Predicated region
    $region6: #{tpu_custom_call.1} parent=1 // pred_check
      _
    $region7: #{tpu_custom_call.1} parent=1 // pred_check_branch
      %24 = sbr.rel (0) target = $region9
    $region8: #{tpu_custom_call.1} parent=1 // pred_region
      %26 = vsyncadd [#allocation7], 0
      %s28 = sshll.u32 %s1, 4
      %s29 = int_to_ptr.hbm [resolvable:$true] %s28
      %s30 = sshll.u32 [#allocation6], 4
      %s31 = int_to_ptr.vmem [resolvable:$true] %s30
      %33 = dma.hbm_to_vmem [thread:$0]  %s29, 16, %s31, [#allocation7]
    $region9: #{tpu_custom_call.1} parent=1 // pred_fallthru
      _
    // Predicated region
    $region10: #{tpu_custom_call.1} parent=1 // pred_check
      _
    $region11: #{tpu_custom_call.1} parent=1 // pred_check_branch
      %35 = sbr.rel (0) target = $region13
    $region12: #{tpu_custom_call.1} parent=1 // pred_region
      %37 = dma.done [#allocation4], 4096
    $region13: #{tpu_custom_call.1} parent=1 // pred_fallthru
      _
    // Predicated region
    $region14: #{tpu_custom_call.1} parent=1 // pred_check
      _
    $region15: #{tpu_custom_call.1} parent=1 // pred_check_branch
      %39 = sbr.rel (0) target = $region17
    $region16: #{tpu_custom_call.1} parent=1 // pred_region
      %41 = dma.done [#allocation7], 16
    $region17: #{tpu_custom_call.1} parent=1 // pred_fallthru
      _
    %p42 = scmp.eq.s32.totalorder 0, 0
    // Predicated region
    $region18: #{tpu_custom_call.1} parent=1 // pred_check
      %p43 = pneg %p42
    $region19: #{tpu_custom_call.1} parent=1 // pred_check_branch
      %45 = sbr.rel (%p43) target = $region21
    $region20: #{tpu_custom_call.1} parent=1 // pred_region
      %46 = vst [vmem:[#allocation2] sm:$0x1] 0.0
    $region21: #{tpu_custom_call.1} parent=1 // pred_fallthru
      _
    %v47 = vld [vmem:[#allocation3] sm:$0xff]
    %v48 = vld [vmem:[#allocation3 + $0x8] sm:$0xff]
    %v49 = vld [vmem:[#allocation3 + $0x10] sm:$0xff]
    %v50 = vld [vmem:[#allocation3 + $0x18] sm:$0xff]
    %v51 = vld [vmem:[#allocation3 + $0x20] sm:$0xff]
    %v52 = vld [vmem:[#allocation3 + $0x28] sm:$0xff]
    %v53 = vld [vmem:[#allocation3 + $0x30] sm:$0xff]
    %v54 = vld [vmem:[#allocation3 + $0x38] sm:$0xff]
    %v55 = vld [vmem:[#allocation3 + $0x40] sm:$0xff]
    %v56 = vld [vmem:[#allocation3 + $0x48] sm:$0xff]
    %v57 = vld [vmem:[#allocation3 + $0x50] sm:$0xff]
    %v58 = vld [vmem:[#allocation3 + $0x58] sm:$0xff]
    %v59 = vld [vmem:[#allocation3 + $0x60] sm:$0xff]
    %v60 = vld [vmem:[#allocation3 + $0x68] sm:$0xff]
    %v61 = vld [vmem:[#allocation3 + $0x70] sm:$0xff]
    %v62 = vld [vmem:[#allocation3 + $0x78] sm:$0xff]
    %v63 = vld [vmem:[#allocation3 + $0x80] sm:$0xff]
    %v64 = vld [vmem:[#allocation3 + $0x88] sm:$0xff]
    %v65 = vld [vmem:[#allocation3 + $0x90] sm:$0xff]
    %v66 = vld [vmem:[#allocation3 + $0x98] sm:$0xff]
    %v67 = vld [vmem:[#allocation3 + $0xa0] sm:$0xff]
    %v68 = vld [vmem:[#allocation3 + $0xa8] sm:$0xff]
    %v69 = vld [vmem:[#allocation3 + $0xb0] sm:$0xff]
    %v70 = vld [vmem:[#allocation3 + $0xb8] sm:$0xff]
    %v71 = vld [vmem:[#allocation3 + $0xc0] sm:$0xff]
    %v72 = vld [vmem:[#allocation3 + $0xc8] sm:$0xff]
    %v73 = vld [vmem:[#allocation3 + $0xd0] sm:$0xff]
    %v74 = vld [vmem:[#allocation3 + $0xd8] sm:$0xff]
    %v75 = vld [vmem:[#allocation3 + $0xe0] sm:$0xff]
    %v76 = vld [vmem:[#allocation3 + $0xe8] sm:$0xff]
    %v77 = vld [vmem:[#allocation3 + $0xf0] sm:$0xff]
    %v78 = vld [vmem:[#allocation3 + $0xf8] sm:$0xff]
    %v79 = vld [vmem:[#allocation2] sm:$0x1]
    %v80 = vmul.f32 %v47, %v47
    %v81 = vmul.f32 %v48, %v48
    %v82 = vmul.f32 %v49, %v49
    %v83 = vmul.f32 %v50, %v50
    %v84 = vmul.f32 %v51, %v51
    %v85 = vmul.f32 %v52, %v52
    %v86 = vmul.f32 %v53, %v53
    %v87 = vmul.f32 %v54, %v54
    %v88 = vmul.f32 %v55, %v55
    %v89 = vmul.f32 %v56, %v56
    %v90 = vmul.f32 %v57, %v57
    %v91 = vmul.f32 %v58, %v58
    %v92 = vmul.f32 %v59, %v59
    %v93 = vmul.f32 %v60, %v60
    %v94 = vmul.f32 %v61, %v61
    %v95 = vmul.f32 %v62, %v62
    %v96 = vmul.f32 %v63, %v63
    %v97 = vmul.f32 %v64, %v64
    %v98 = vmul.f32 %v65, %v65
    %v99 = vmul.f32 %v66, %v66
    %v100 = vmul.f32 %v67, %v67
    %v101 = vmul.f32 %v68, %v68
    %v102 = vmul.f32 %v69, %v69
    %v103 = vmul.f32 %v70, %v70
    %v104 = vmul.f32 %v71, %v71
    %v105 = vmul.f32 %v72, %v72
    %v106 = vmul.f32 %v73, %v73
    %v107 = vmul.f32 %v74, %v74
    %v108 = vmul.f32 %v75, %v75
    %v109 = vmul.f32 %v76, %v76
    %v110 = vmul.f32 %v77, %v77
    %v111 = vmul.f32 %v78, %v78
    %v112 = vadd.f32 %v80, %v81
    %v113 = vadd.f32 %v112, %v82
    %v114 = vadd.f32 %v113, %v83
    %v115 = vadd.f32 %v114, %v84
    %v116 = vadd.f32 %v115, %v85
    %v117 = vadd.f32 %v116, %v86
    %v118 = vadd.f32 %v117, %v87
    %v119 = vadd.f32 %v118, %v88
    %v120 = vadd.f32 %v119, %v89
    %v121 = vadd.f32 %v120, %v90
    %v122 = vadd.f32 %v121, %v91
    %v123 = vadd.f32 %v122, %v92
    %v124 = vadd.f32 %v123, %v93
    %v125 = vadd.f32 %v124, %v94
    %v126 = vadd.f32 %v125, %v95
    %v127 = vadd.f32 %v126, %v96
    %v128 = vadd.f32 %v127, %v97
    %v129 = vadd.f32 %v128, %v98
    %v130 = vadd.f32 %v129, %v99
    %v131 = vadd.f32 %v130, %v100
    %v132 = vadd.f32 %v131, %v101
    %v133 = vadd.f32 %v132, %v102
    %v134 = vadd.f32 %v133, %v103
    %v135 = vadd.f32 %v134, %v104
    %v136 = vadd.f32 %v135, %v105
    %v137 = vadd.f32 %v136, %v106
    %v138 = vadd.f32 %v137, %v107
    %v139 = vadd.f32 %v138, %v108
    %v140 = vadd.f32 %v139, %v109
    %v141 = vadd.f32 %v140, %v110
    %v142 = vadd.f32 %v141, %v111
    %v143 = vrot.slane %v142, 4
    %v144 = vadd.f32 %v142, %v143
    %v145 = vrot.slane %v144, 2
    %v146 = vadd.f32 %v144, %v145
    %v147 = vrot.slane %v146, 1
    %v148 = vadd.f32 %v146, %v147
    %v149 = vadd.f32 %v79, %v148
    %150 = vst [vmem:[#allocation2] sm:$0x1] %v149
    // Predicated region
    $region22: #{tpu_custom_call.1} parent=1 // pred_check
      %p151 = pneg %p42
    $region23: #{tpu_custom_call.1} parent=1 // pred_check_branch
      %153 = sbr.rel (%p151) target = $region25
    $region24: #{tpu_custom_call.1} parent=1 // pred_region
      %v154 = vld [vmem:[#allocation6] sm:$0x1]
      %v155 = vld [vmem:[#allocation2] sm:$0x1]
      %v156 = vmax.f32 %v155, 1e-24
      %v157 = vrsqrt.pop %v156
      %v158 = vmul.f32 %v157, %v156
      %v159 = vmul.f32 %v158, %v157
      %v160 = vmul.f32 0.5, %v159
      %v161 = vsub.f32 1.5, %v160
      %v162 = vmul.f32 %v157, %v161
      %vm163 = vweird.f32 %v156
      %vm164 = vweird.f32 %v157
      %vm165 = vmor %vm163, %vm164
      %v166 = vsel %vm165, %v157, %v162
      %v167 = vmul.f32 %v154, %v166
      %168 = vst [vmem:[#allocation8] sm:$0x1] %v167
    $region25: #{tpu_custom_call.1} parent=1 // pred_fallthru
      _
    // Predicated region
    $region26: #{tpu_custom_call.1} parent=1 // pred_check
      _
    $region27: #{tpu_custom_call.1} parent=1 // pred_check_branch
      %170 = sbr.rel (0) target = $region29
    $region28: #{tpu_custom_call.1} parent=1 // pred_region
      %172 = vsyncadd [#allocation5], 0
      %s174 = sshll.u32 [#allocation8], 4
      %s175 = int_to_ptr.vmem [resolvable:$true] %s174
      %s176 = sshll.u32 %s2, 4
      %s177 = int_to_ptr.hbm [resolvable:$true] %s176
      %179 = dma.vmem_to_hbm [thread:$0]  %s175, 16, %s177, [#allocation5]
    $region29: #{tpu_custom_call.1} parent=1 // pred_fallthru
      _
    // Predicated region
    $region30: #{tpu_custom_call.1} parent=1 // pred_check
      _
    $region31: #{tpu_custom_call.1} parent=1 // pred_check_branch
      %181 = sbr.rel (0) target = $region33
    $region32: #{tpu_custom_call.1} parent=1 // pred_region
      %183 = dma.done [#allocation5], 16
    $region33: #{tpu_custom_call.1} parent=1 // pred_fallthru
      _
    %184 = vsyncpa [#allocation4], 1
    %185 = vsyncpa [#allocation7], 1
    %186 = vsyncpa [#allocation5], 1

</llo_original>
